<compile_context>
chip_gen: v5e
topology: v5e:2x2
jax: 0.10.0
libtpu: 0.0.40
codegen_flags: <defaults>
</compile_context>

<pallas_src>
import functools
import jax
import jax.numpy as jnp
from jax.experimental import pallas as pl
from jax.experimental.pallas import tpu as pltpu


def residual_unit_kernel(xl_ref, x_ref, xr_ref, w1_ref, b1_ref, w2_ref,
                         b2_ref, ab_ref, o_ref, xbuf_ref, acc_ref, *,
                         kernel_size, dilation, pad):
    # xl_ref, xr_ref: (C_in, pad)        left / right halo columns (zero at edges)
    # x_ref:          (C_in, tile_T)     main input tile (also the residual)
    # w1_ref:         (K, C_out, C_in)   dilated conv weights (tap-major)
    # b1_ref, b2_ref: (C_out, 1)
    # w2_ref:         (C_out, C_in)      1x1 conv weights
    # ab_ref:         (2,) in SMEM       PReLU slopes
    # o_ref:          (C_out, tile_T)
    # xbuf_ref:       (C_in, tile_T + 2*pad) VMEM scratch (haloed window)
    # acc_ref:        (C_out, tile_T) f32 VMEM accumulator
    c_in, t_t = x_ref.shape

    # Assemble the haloed window [left | tile | right] in VMEM (no HBM pad pass).
    xbuf_ref[:, 0:pad] = xl_ref[...].astype(jnp.float32)
    xbuf_ref[:, pad:pad + t_t] = x_ref[...].astype(jnp.float32)
    xbuf_ref[:, pad + t_t:pad + t_t + pad] = xr_ref[...].astype(jnp.float32)

    # Dilated conv as K lane-shifted matmuls on the MXU, accumulated in VMEM
    # f32.  Bias of conv1 is folded into the first tap.
    acc_ref[...] = jnp.dot(w1_ref[0], xbuf_ref[:, 0:t_t],
                           preferred_element_type=jnp.float32) + b1_ref[...]
    for k in range(1, kernel_size):
        s = k * dilation                       # static lane offset
        acc_ref[...] += jnp.dot(w1_ref[k], xbuf_ref[:, s:s + t_t],
                                preferred_element_type=jnp.float32)

    a1 = ab_ref[0]
    a2 = ab_ref[1]

    y = acc_ref[...]
    y = jnp.where(y > 0, y, a1 * y)                                   # PReLU 1

    z = jnp.dot(w2_ref[...], y, preferred_element_type=jnp.float32)   # 1x1 conv
    z = z + b2_ref[...]
    z = jnp.where(z > 0, z, a2 * z)                                   # PReLU 2

    o_ref[...] = (z + x_ref[...].astype(jnp.float32)).astype(o_ref.dtype)


def _pick_tile_t(T, pad, target):
    """Largest lane-dense (multiple of 128) tile <= target that divides T and
    is >= pad (so a one-neighbour halo suffices); fallback: one full-T block."""
    if T % 128 == 0:
        t = (min(int(target), T) // 128) * 128
        while t > 0 and T % t != 0:
            t -= 128
        if t >= max(pad, 128):
            return t
    return T


def residual_unit(x, w1, b1, w2, b2, a1, a2, *, dilation, tile_t_target=512):
    """x: (B, C, T) float32 in the PyTorch NCL layout (no transposes needed).
    w1: (C_out, C_in, K) torch conv weight; w2: (C_out, C_in, 1); b*: (C_out,).
    a1, a2: scalar PReLU slopes. Requires C_out == C_in (residual add)."""
    B, C_in, T = x.shape
    C_out, _, K = w1.shape
    assert C_out == C_in, "residual add requires n_in == n_out"
    pad = (K * dilation - dilation) // 2       # PyTorch 'same' padding (odd K)
    assert pad >= 1, "kernel expects K > 1 for conv1"

    tile_T = _pick_tile_t(T, pad, tile_t_target)
    nt = T // tile_T
    assert nt * tile_T == T

    # --- glue: tiny halo side-arrays (2*pad columns per tile) instead of
    # materializing a padded copy of the whole activation in HBM.
    xr4 = x.reshape(B, C_in, nt, tile_T)
    zh = jnp.zeros((B, C_in, 1, pad), x.dtype)
    if nt > 1:
        assert pad <= tile_T
        left = jnp.concatenate([zh, xr4[:, :, :-1, tile_T - pad:]], axis=2)
        right = jnp.concatenate([xr4[:, :, 1:, :pad], zh], axis=2)
    else:
        left = zh
        right = zh
    left = jnp.transpose(left, (0, 2, 1, 3))     # (B, nt, C_in, pad)
    right = jnp.transpose(right, (0, 2, 1, 3))   # (B, nt, C_in, pad)

    # --- glue: weight / bias reshapes (weight_norm at init == identity).
    w1_k = jnp.transpose(w1, (2, 0, 1)).astype(jnp.float32)   # (K, C_out, C_in)
    w2_m = w2[:, :, 0].astype(jnp.float32)                    # (C_out, C_in)
    b1_r = b1.reshape(C_out, 1).astype(jnp.float32)
    b2_r = b2.reshape(C_out, 1).astype(jnp.float32)
    alphas = jnp.stack([jnp.asarray(a1, jnp.float32),
                        jnp.asarray(a2, jnp.float32)])         # (2,) -> SMEM

    kernel = functools.partial(residual_unit_kernel, kernel_size=K,
                               dilation=dilation, pad=pad)

    out = pl.pallas_call(
        kernel,
        out_shape=jax.ShapeDtypeStruct((B, C_out, T), x.dtype),
        grid_spec=pltpu.PrefetchScalarGridSpec(
            num_scalar_prefetch=0,
            grid=(B, nt),
            in_specs=[
                pl.BlockSpec((None, None, C_in, pad), lambda b, t: (b, t, 0, 0)),
                pl.BlockSpec((None, C_in, tile_T), lambda b, t: (b, 0, t)),
                pl.BlockSpec((None, None, C_in, pad), lambda b, t: (b, t, 0, 0)),
                pl.BlockSpec((K, C_out, C_in), lambda b, t: (0, 0, 0)),
                pl.BlockSpec((C_out, 1), lambda b, t: (0, 0)),
                pl.BlockSpec((C_out, C_in), lambda b, t: (0, 0)),
                pl.BlockSpec((C_out, 1), lambda b, t: (0, 0)),
                pl.BlockSpec(memory_space=pltpu.MemorySpace.SMEM),
            ],
            out_specs=pl.BlockSpec((None, C_out, tile_T), lambda b, t: (b, 0, t)),
            scratch_shapes=[
                pltpu.VMEM((C_in, tile_T + 2 * pad), jnp.float32),
                pltpu.VMEM((C_out, tile_T), jnp.float32),
            ]),
        compiler_params=pltpu.CompilerParams(
            dimension_semantics=("parallel", "parallel")),
    )(left, x, right, w1_k, b1_r, w2_m, b2_r, alphas)

    return out


def residual_unit_ref(x, w1, b1, w2, b2, a1, a2, *, dilation):
    """Pure-JAX reference (NCL conv) for correctness checking."""
    K = w1.shape[2]
    pad = (K * dilation - dilation) // 2
    y = jax.lax.conv_general_dilated(
        x, w1, window_strides=(1,), padding=[(pad, pad)],
        rhs_dilation=(dilation,), dimension_numbers=("NCH", "OIH", "NCH"))
    y = y + b1[None, :, None]
    y = jnp.where(y > 0, y, a1 * y)
    z = jax.lax.conv_general_dilated(
        y, w2, window_strides=(1,), padding=[(0, 0)],
        dimension_numbers=("NCH", "OIH", "NCH"))
    z = z + b2[None, :, None]
    z = jnp.where(z > 0, z, a2 * z)
    return z + x


if __name__ == "__main__":
    def run_case(B, C, T, dilation, tile_t_target, K=7):
        key = jax.random.PRNGKey(0)
        k_x, k_w1, k_b1, k_w2, k_b2 = jax.random.split(key, 5)
        x = jax.random.normal(k_x, (B, C, T), dtype=jnp.float32)
        # torch Conv1d weight shapes: (out_channels, in_channels, kernel_size)
        w1 = 0.1 * jax.random.normal(k_w1, (C, C, K), dtype=jnp.float32)
        b1 = 0.1 * jax.random.normal(k_b1, (C,), dtype=jnp.float32)
        w2 = 0.1 * jax.random.normal(k_w2, (C, C, 1), dtype=jnp.float32)
        b2 = 0.1 * jax.random.normal(k_b2, (C,), dtype=jnp.float32)
        a1 = jnp.float32(0.25)  # nn.PReLU default init
        a2 = jnp.float32(0.25)

        out = residual_unit(x, w1, b1, w2, b2, a1, a2,
                            dilation=dilation, tile_t_target=tile_t_target)
        out = jax.block_until_ready(out)
        ref = residual_unit_ref(x, w1, b1, w2, b2, a1, a2, dilation=dilation)
        assert out.shape == (B, C, T)
        assert jnp.allclose(out, ref, atol=1e-4, rtol=1e-4), \
            f"mismatch vs reference (B={B}, C={C}, T={T}, d={dilation})"

    # Multi-tile path: two 128-wide time tiles with halo exchange.
    run_case(B=2, C=4, T=256, dilation=3, tile_t_target=128)
    # Single full-T tile fallback path (original tiny shape).
    run_case(B=2, C=4, T=16, dilation=3, tile_t_target=512)
    # Dilation=1 path (pad=3), slightly wider channels.
    run_case(B=1, C=8, T=128, dilation=1, tile_t_target=128)

    print("KERNEL_OK")
</pallas_src>

<mosaic_0001>
module attributes {stable_mosaic.version = 11 : i64} {
  func.func @residual_unit_kernel(%arg0: i32, %arg1: i32, %arg2: memref<1x1x4x9xf32, #tpu.memory_space<vmem>>, %arg3: memref<1x4x128xf32, #tpu.memory_space<vmem>>, %arg4: memref<1x1x4x9xf32, #tpu.memory_space<vmem>>, %arg5: memref<7x4x4xf32, #tpu.memory_space<vmem>>, %arg6: memref<4x1xf32, #tpu.memory_space<vmem>>, %arg7: memref<4x4xf32, #tpu.memory_space<vmem>>, %arg8: memref<4x1xf32, #tpu.memory_space<vmem>>, %arg9: memref<2xf32, #tpu.memory_space<smem>>, %arg10: memref<1x4x128xf32, #tpu.memory_space<vmem>>, %arg11: memref<4x146xf32, #tpu.memory_space<vmem>>, %arg12: memref<4x128xf32, #tpu.memory_space<vmem>>) attributes {dimension_semantics = [#tpu.dimension_semantics<parallel>, #tpu.dimension_semantics<parallel>], iteration_bounds = array<i64: 2, 2>, scalar_prefetch = 0 : i64, scratch_operands = 2 : i64, tpu.core_type = #tpu.core_type<tc>, window_params = [{transform_indices = @transform_0, window_bounds = array<i64: 1, 1, 4, 9>}, {transform_indices = @transform_1, window_bounds = array<i64: 1, 4, 128>}, {transform_indices = @transform_2, window_bounds = array<i64: 1, 1, 4, 9>}, {pipeline_mode = #tpu.pipeline_mode<synchronous>, transform_indices = @transform_3, window_bounds = array<i64: 7, 4, 4>}, {pipeline_mode = #tpu.pipeline_mode<synchronous>, transform_indices = @transform_4, window_bounds = array<i64: 4, 1>}, {pipeline_mode = #tpu.pipeline_mode<synchronous>, transform_indices = @transform_5, window_bounds = array<i64: 4, 4>}, {pipeline_mode = #tpu.pipeline_mode<synchronous>, transform_indices = @transform_6, window_bounds = array<i64: 4, 1>}, {transform_indices = @transform_7, window_bounds = array<i64: 2>}, {transform_indices = @transform_8, window_bounds = array<i64: 1, 4, 128>}]} {
    %c0 = arith.constant 0 : index
    %c0_0 = arith.constant 0 : index
    %c0_1 = arith.constant 0 : index
    %c0_2 = arith.constant 0 : index
    %0 = vector.load %arg2[%c0, %c0_0, %c0_1, %c0_2] : memref<1x1x4x9xf32, #tpu.memory_space<vmem>>, vector<1x1x4x9xf32>
    %1 = vector.shape_cast %0 : vector<1x1x4x9xf32> to vector<4x9xf32>
    %c0_3 = arith.constant 0 : index
    %c0_4 = arith.constant 0 : index
    %2 = vector.load %arg11[%c0_3, %c0_4] : memref<4x146xf32, #tpu.memory_space<vmem>>, vector<4x9xf32>
    tpu.vector_store %arg11[%c0_3, %c0_4], %1 {strides = array<i32>} : memref<4x146xf32, #tpu.memory_space<vmem>>, vector<4x9xf32>,
    %c0_5 = arith.constant 0 : index
    %c0_6 = arith.constant 0 : index
    %c0_7 = arith.constant 0 : index
    %3 = vector.load %arg3[%c0_5, %c0_6, %c0_7] : memref<1x4x128xf32, #tpu.memory_space<vmem>>, vector<1x4x128xf32>
    %4 = vector.shape_cast %3 : vector<1x4x128xf32> to vector<4x128xf32>
    %c0_8 = arith.constant 0 : index
    %c9 = arith.constant 9 : index
    %5 = vector.load %arg11[%c0_8, %c9] : memref<4x146xf32, #tpu.memory_space<vmem>>, vector<4x128xf32>
    tpu.vector_store %arg11[%c0_8, %c9], %4 {strides = array<i32>} : memref<4x146xf32, #tpu.memory_space<vmem>>, vector<4x128xf32>,
    %c0_9 = arith.constant 0 : index
    %c0_10 = arith.constant 0 : index
    %c0_11 = arith.constant 0 : index
    %c0_12 = arith.constant 0 : index
    %6 = vector.load %arg4[%c0_9, %c0_10, %c0_11, %c0_12] : memref<1x1x4x9xf32, #tpu.memory_space<vmem>>, vector<1x1x4x9xf32>
    %7 = vector.shape_cast %6 : vector<1x1x4x9xf32> to vector<4x9xf32>
    %c0_13 = arith.constant 0 : index
    %c137 = arith.constant 137 : index
    %8 = vector.load %arg11[%c0_13, %c137] : memref<4x146xf32, #tpu.memory_space<vmem>>, vector<4x9xf32>
    tpu.vector_store %arg11[%c0_13, %c137], %7 {strides = array<i32>} : memref<4x146xf32, #tpu.memory_space<vmem>>, vector<4x9xf32>,
    %c0_14 = arith.constant 0 : index
    %c0_15 = arith.constant 0 : index
    %c0_16 = arith.constant 0 : index
    %9 = vector.load %arg5[%c0_14, %c0_15, %c0_16] : memref<7x4x4xf32, #tpu.memory_space<vmem>>, vector<1x4x4xf32>
    %10 = vector.shape_cast %9 : vector<1x4x4xf32> to vector<4x4xf32>
    %c0_17 = arith.constant 0 : index
    %c0_18 = arith.constant 0 : index
    %11 = vector.load %arg11[%c0_17, %c0_18] : memref<4x146xf32, #tpu.memory_space<vmem>>, vector<4x128xf32>
    %cst = arith.constant dense<0.000000e+00> : vector<4x128xf32>
    %12 = tpu.matmul %10, %11, %cst {dimension_numbers = #tpu.dot_dimension_numbers<[1], [0], [0], [1], [0, 0, 1, 1], [], []>} : vector<4x4xf32>, vector<4x128xf32>, vector<4x128xf32> -> vector<4x128xf32>
    %c0_19 = arith.constant 0 : index
    %c0_20 = arith.constant 0 : index
    %13 = vector.load %arg6[%c0_19, %c0_20] : memref<4x1xf32, #tpu.memory_space<vmem>>, vector<4x1xf32>
    %14 = vector.broadcast %13 : vector<4x1xf32> to vector<4x128xf32>
    %15 = arith.addf %12, %14 : vector<4x128xf32>
    %c0_21 = arith.constant 0 : index
    %c0_22 = arith.constant 0 : index
    %16 = vector.load %arg12[%c0_21, %c0_22] : memref<4x128xf32, #tpu.memory_space<vmem>>, vector<4x128xf32>
    tpu.vector_store %arg12[%c0_21, %c0_22], %15 {strides = array<i32>} : memref<4x128xf32, #tpu.memory_space<vmem>>, vector<4x128xf32>,
    %c0_23 = arith.constant 0 : index
    %c0_24 = arith.constant 0 : index
    %17 = vector.load %arg12[%c0_23, %c0_24] : memref<4x128xf32, #tpu.memory_space<vmem>>, vector<4x128xf32>
    %c1 = arith.constant 1 : index
    %c0_25 = arith.constant 0 : index
    %c0_26 = arith.constant 0 : index
    %18 = vector.load %arg5[%c1, %c0_25, %c0_26] : memref<7x4x4xf32, #tpu.memory_space<vmem>>, vector<1x4x4xf32>
    %19 = vector.shape_cast %18 : vector<1x4x4xf32> to vector<4x4xf32>
    %c0_27 = arith.constant 0 : index
    %c3 = arith.constant 3 : index
    %20 = vector.load %arg11[%c0_27, %c3] : memref<4x146xf32, #tpu.memory_space<vmem>>, vector<4x128xf32>
    %cst_28 = arith.constant dense<0.000000e+00> : vector<4x128xf32>
    %21 = tpu.matmul %19, %20, %cst_28 {dimension_numbers = #tpu.dot_dimension_numbers<[1], [0], [0], [1], [0, 0, 1, 1], [], []>} : vector<4x4xf32>, vector<4x128xf32>, vector<4x128xf32> -> vector<4x128xf32>
    %22 = arith.addf %17, %21 : vector<4x128xf32>
    %c0_29 = arith.constant 0 : index
    %c0_30 = arith.constant 0 : index
    %23 = vector.load %arg12[%c0_29, %c0_30] : memref<4x128xf32, #tpu.memory_space<vmem>>, vector<4x128xf32>
    tpu.vector_store %arg12[%c0_29, %c0_30], %22 {strides = array<i32>} : memref<4x128xf32, #tpu.memory_space<vmem>>, vector<4x128xf32>,
    %c0_31 = arith.constant 0 : index
    %c0_32 = arith.constant 0 : index
    %24 = vector.load %arg12[%c0_31, %c0_32] : memref<4x128xf32, #tpu.memory_space<vmem>>, vector<4x128xf32>
    %c2 = arith.constant 2 : index
    %c0_33 = arith.constant 0 : index
    %c0_34 = arith.constant 0 : index
    %25 = vector.load %arg5[%c2, %c0_33, %c0_34] : memref<7x4x4xf32, #tpu.memory_space<vmem>>, vector<1x4x4xf32>
    %26 = vector.shape_cast %25 : vector<1x4x4xf32> to vector<4x4xf32>
    %c0_35 = arith.constant 0 : index
    %c6 = arith.constant 6 : index
    %27 = vector.load %arg11[%c0_35, %c6] : memref<4x146xf32, #tpu.memory_space<vmem>>, vector<4x128xf32>
    %cst_36 = arith.constant dense<0.000000e+00> : vector<4x128xf32>
    %28 = tpu.matmul %26, %27, %cst_36 {dimension_numbers = #tpu.dot_dimension_numbers<[1], [0], [0], [1], [0, 0, 1, 1], [], []>} : vector<4x4xf32>, vector<4x128xf32>, vector<4x128xf32> -> vector<4x128xf32>
    %29 = arith.addf %24, %28 : vector<4x128xf32>
    %c0_37 = arith.constant 0 : index
    %c0_38 = arith.constant 0 : index
    %30 = vector.load %arg12[%c0_37, %c0_38] : memref<4x128xf32, #tpu.memory_space<vmem>>, vector<4x128xf32>
    tpu.vector_store %arg12[%c0_37, %c0_38], %29 {strides = array<i32>} : memref<4x128xf32, #tpu.memory_space<vmem>>, vector<4x128xf32>,
    %c0_39 = arith.constant 0 : index
    %c0_40 = arith.constant 0 : index
    %31 = vector.load %arg12[%c0_39, %c0_40] : memref<4x128xf32, #tpu.memory_space<vmem>>, vector<4x128xf32>
    %c3_41 = arith.constant 3 : index
    %c0_42 = arith.constant 0 : index
    %c0_43 = arith.constant 0 : index
    %32 = vector.load %arg5[%c3_41, %c0_42, %c0_43] : memref<7x4x4xf32, #tpu.memory_space<vmem>>, vector<1x4x4xf32>
    %33 = vector.shape_cast %32 : vector<1x4x4xf32> to vector<4x4xf32>
    %c0_44 = arith.constant 0 : index
    %c9_45 = arith.constant 9 : index
    %34 = vector.load %arg11[%c0_44, %c9_45] : memref<4x146xf32, #tpu.memory_space<vmem>>, vector<4x128xf32>
    %cst_46 = arith.constant dense<0.000000e+00> : vector<4x128xf32>
    %35 = tpu.matmul %33, %34, %cst_46 {dimension_numbers = #tpu.dot_dimension_numbers<[1], [0], [0], [1], [0, 0, 1, 1], [], []>} : vector<4x4xf32>, vector<4x128xf32>, vector<4x128xf32> -> vector<4x128xf32>
    %36 = arith.addf %31, %35 : vector<4x128xf32>
    %c0_47 = arith.constant 0 : index
    %c0_48 = arith.constant 0 : index
    %37 = vector.load %arg12[%c0_47, %c0_48] : memref<4x128xf32, #tpu.memory_space<vmem>>, vector<4x128xf32>
    tpu.vector_store %arg12[%c0_47, %c0_48], %36 {strides = array<i32>} : memref<4x128xf32, #tpu.memory_space<vmem>>, vector<4x128xf32>,
    %c0_49 = arith.constant 0 : index
    %c0_50 = arith.constant 0 : index
    %38 = vector.load %arg12[%c0_49, %c0_50] : memref<4x128xf32, #tpu.memory_space<vmem>>, vector<4x128xf32>
    %c4 = arith.constant 4 : index
    %c0_51 = arith.constant 0 : index
    %c0_52 = arith.constant 0 : index
    %39 = vector.load %arg5[%c4, %c0_51, %c0_52] : memref<7x4x4xf32, #tpu.memory_space<vmem>>, vector<1x4x4xf32>
    %40 = vector.shape_cast %39 : vector<1x4x4xf32> to vector<4x4xf32>
    %c0_53 = arith.constant 0 : index
    %c12 = arith.constant 12 : index
    %41 = vector.load %arg11[%c0_53, %c12] : memref<4x146xf32, #tpu.memory_space<vmem>>, vector<4x128xf32>
    %cst_54 = arith.constant dense<0.000000e+00> : vector<4x128xf32>
    %42 = tpu.matmul %40, %41, %cst_54 {dimension_numbers = #tpu.dot_dimension_numbers<[1], [0], [0], [1], [0, 0, 1, 1], [], []>} : vector<4x4xf32>, vector<4x128xf32>, vector<4x128xf32> -> vector<4x128xf32>
    %43 = arith.addf %38, %42 : vector<4x128xf32>
    %c0_55 = arith.constant 0 : index
    %c0_56 = arith.constant 0 : index
    %44 = vector.load %arg12[%c0_55, %c0_56] : memref<4x128xf32, #tpu.memory_space<vmem>>, vector<4x128xf32>
    tpu.vector_store %arg12[%c0_55, %c0_56], %43 {strides = array<i32>} : memref<4x128xf32, #tpu.memory_space<vmem>>, vector<4x128xf32>,
    %c0_57 = arith.constant 0 : index
    %c0_58 = arith.constant 0 : index
    %45 = vector.load %arg12[%c0_57, %c0_58] : memref<4x128xf32, #tpu.memory_space<vmem>>, vector<4x128xf32>
    %c5 = arith.constant 5 : index
    %c0_59 = arith.constant 0 : index
    %c0_60 = arith.constant 0 : index
    %46 = vector.load %arg5[%c5, %c0_59, %c0_60] : memref<7x4x4xf32, #tpu.memory_space<vmem>>, vector<1x4x4xf32>
    %47 = vector.shape_cast %46 : vector<1x4x4xf32> to vector<4x4xf32>
    %c0_61 = arith.constant 0 : index
    %c15 = arith.constant 15 : index
    %48 = vector.load %arg11[%c0_61, %c15] : memref<4x146xf32, #tpu.memory_space<vmem>>, vector<4x128xf32>
    %cst_62 = arith.constant dense<0.000000e+00> : vector<4x128xf32>
    %49 = tpu.matmul %47, %48, %cst_62 {dimension_numbers = #tpu.dot_dimension_numbers<[1], [0], [0], [1], [0, 0, 1, 1], [], []>} : vector<4x4xf32>, vector<4x128xf32>, vector<4x128xf32> -> vector<4x128xf32>
    %50 = arith.addf %45, %49 : vector<4x128xf32>
    %c0_63 = arith.constant 0 : index
    %c0_64 = arith.constant 0 : index
    %51 = vector.load %arg12[%c0_63, %c0_64] : memref<4x128xf32, #tpu.memory_space<vmem>>, vector<4x128xf32>
    tpu.vector_store %arg12[%c0_63, %c0_64], %50 {strides = array<i32>} : memref<4x128xf32, #tpu.memory_space<vmem>>, vector<4x128xf32>,
    %c0_65 = arith.constant 0 : index
    %c0_66 = arith.constant 0 : index
    %52 = vector.load %arg12[%c0_65, %c0_66] : memref<4x128xf32, #tpu.memory_space<vmem>>, vector<4x128xf32>
    %c6_67 = arith.constant 6 : index
    %c0_68 = arith.constant 0 : index
    %c0_69 = arith.constant 0 : index
    %53 = vector.load %arg5[%c6_67, %c0_68, %c0_69] : memref<7x4x4xf32, #tpu.memory_space<vmem>>, vector<1x4x4xf32>
    %54 = vector.shape_cast %53 : vector<1x4x4xf32> to vector<4x4xf32>
    %c0_70 = arith.constant 0 : index
    %c18 = arith.constant 18 : index
    %55 = vector.load %arg11[%c0_70, %c18] : memref<4x146xf32, #tpu.memory_space<vmem>>, vector<4x128xf32>
    %cst_71 = arith.constant dense<0.000000e+00> : vector<4x128xf32>
    %56 = tpu.matmul %54, %55, %cst_71 {dimension_numbers = #tpu.dot_dimension_numbers<[1], [0], [0], [1], [0, 0, 1, 1], [], []>} : vector<4x4xf32>, vector<4x128xf32>, vector<4x128xf32> -> vector<4x128xf32>
    %57 = arith.addf %52, %56 : vector<4x128xf32>
    %c0_72 = arith.constant 0 : index
    %c0_73 = arith.constant 0 : index
    %58 = vector.load %arg12[%c0_72, %c0_73] : memref<4x128xf32, #tpu.memory_space<vmem>>, vector<4x128xf32>
    tpu.vector_store %arg12[%c0_72, %c0_73], %57 {strides = array<i32>} : memref<4x128xf32, #tpu.memory_space<vmem>>, vector<4x128xf32>,
    %c0_74 = arith.constant 0 : index
    %59 = memref.load %arg9[%c0_74] : memref<2xf32, #tpu.memory_space<smem>>
    %c1_75 = arith.constant 1 : index
    %60 = memref.load %arg9[%c1_75] : memref<2xf32, #tpu.memory_space<smem>>
    %c0_76 = arith.constant 0 : index
    %c0_77 = arith.constant 0 : index
    %61 = vector.load %arg12[%c0_76, %c0_77] : memref<4x128xf32, #tpu.memory_space<vmem>>, vector<4x128xf32>
    %cst_78 = arith.constant 0.000000e+00 : f32
    %62 = vector.broadcast %cst_78 : f32 to vector<4x128xf32>
    %63 = arith.cmpf ogt, %61, %62 : vector<4x128xf32>
    %64 = vector.broadcast %59 : f32 to vector<4x128xf32>
    %65 = arith.mulf %64, %61 : vector<4x128xf32>
    %66 = arith.select %63, %61, %65 : vector<4x128xi1>, vector<4x128xf32>
    %c0_79 = arith.constant 0 : index
    %c0_80 = arith.constant 0 : index
    %67 = vector.load %arg7[%c0_79, %c0_80] : memref<4x4xf32, #tpu.memory_space<vmem>>, vector<4x4xf32>
    %cst_81 = arith.constant dense<0.000000e+00> : vector<4x128xf32>
    %68 = tpu.matmul %67, %66, %cst_81 {dimension_numbers = #tpu.dot_dimension_numbers<[1], [0], [0], [1], [0, 0, 1, 1], [], []>} : vector<4x4xf32>, vector<4x128xf32>, vector<4x128xf32> -> vector<4x128xf32>
    %c0_82 = arith.constant 0 : index
    %c0_83 = arith.constant 0 : index
    %69 = vector.load %arg8[%c0_82, %c0_83] : memref<4x1xf32, #tpu.memory_space<vmem>>, vector<4x1xf32>
    %70 = vector.broadcast %69 : vector<4x1xf32> to vector<4x128xf32>
    %71 = arith.addf %68, %70 : vector<4x128xf32>
    %cst_84 = arith.constant 0.000000e+00 : f32
    %72 = vector.broadcast %cst_84 : f32 to vector<4x128xf32>
    %73 = arith.cmpf ogt, %71, %72 : vector<4x128xf32>
    %74 = vector.broadcast %60 : f32 to vector<4x128xf32>
    %75 = arith.mulf %74, %71 : vector<4x128xf32>
    %76 = arith.select %73, %71, %75 : vector<4x128xi1>, vector<4x128xf32>
    %c0_85 = arith.constant 0 : index
    %c0_86 = arith.constant 0 : index
    %c0_87 = arith.constant 0 : index
    %77 = vector.load %arg3[%c0_85, %c0_86, %c0_87] : memref<1x4x128xf32, #tpu.memory_space<vmem>>, vector<1x4x128xf32>
    %78 = vector.shape_cast %77 : vector<1x4x128xf32> to vector<4x128xf32>
    %79 = arith.addf %76, %78 : vector<4x128xf32>
    %c0_88 = arith.constant 0 : index
    %c0_89 = arith.constant 0 : index
    %c0_90 = arith.constant 0 : index
    %80 = vector.load %arg10[%c0_88, %c0_89, %c0_90] : memref<1x4x128xf32, #tpu.memory_space<vmem>>, vector<1x4x128xf32>
    %81 = vector.shape_cast %80 : vector<1x4x128xf32> to vector<4x128xf32>
    %82 = vector.shape_cast %79 : vector<4x128xf32> to vector<1x4x128xf32>
    tpu.vector_store %arg10[%c0_88, %c0_89, %c0_90], %82 {strides = array<i32>} : memref<1x4x128xf32, #tpu.memory_space<vmem>>, vector<1x4x128xf32>,
    return
  }
  func.func @transform_0(%arg0: i32, %arg1: i32) -> (i32, i32, i32, i32) {
    %c0_i32 = arith.constant 0 : i32
    %c0_i32_0 = arith.constant 0 : i32
    %c0_i32_1 = arith.constant 0 : i32
    return %arg0, %arg1, %c0_i32, %c0_i32_0 : i32, i32, i32, i32
  }
  func.func @transform_1(%arg0: i32, %arg1: i32) -> (i32, i32, i32) {
    %c0_i32 = arith.constant 0 : i32
    %c0_i32_0 = arith.constant 0 : i32
    return %arg0, %c0_i32, %arg1 : i32, i32, i32
  }
  func.func @transform_2(%arg0: i32, %arg1: i32) -> (i32, i32, i32, i32) {
    %c0_i32 = arith.constant 0 : i32
    %c0_i32_0 = arith.constant 0 : i32
    %c0_i32_1 = arith.constant 0 : i32
    return %arg0, %arg1, %c0_i32, %c0_i32_0 : i32, i32, i32, i32
  }
  func.func @transform_3(%arg0: i32, %arg1: i32) -> (i32, i32, i32) {
    %c0_i32 = arith.constant 0 : i32
    %c0_i32_0 = arith.constant 0 : i32
    %c0_i32_1 = arith.constant 0 : i32
    %c0_i32_2 = arith.constant 0 : i32
    return %c0_i32, %c0_i32_0, %c0_i32_1 : i32, i32, i32
  }
  func.func @transform_4(%arg0: i32, %arg1: i32) -> (i32, i32) {
    %c0_i32 = arith.constant 0 : i32
    %c0_i32_0 = arith.constant 0 : i32
    %c0_i32_1 = arith.constant 0 : i32
    return %c0_i32, %c0_i32_0 : i32, i32
  }
  func.func @transform_5(%arg0: i32, %arg1: i32) -> (i32, i32) {
    %c0_i32 = arith.constant 0 : i32
    %c0_i32_0 = arith.constant 0 : i32
    %c0_i32_1 = arith.constant 0 : i32
    return %c0_i32, %c0_i32_0 : i32, i32
  }
  func.func @transform_6(%arg0: i32, %arg1: i32) -> (i32, i32) {
    %c0_i32 = arith.constant 0 : i32
    %c0_i32_0 = arith.constant 0 : i32
    %c0_i32_1 = arith.constant 0 : i32
    return %c0_i32, %c0_i32_0 : i32, i32
  }
  func.func @transform_7(%arg0: i32, %arg1: i32) -> i32 {
    %c0_i32 = arith.constant 0 : i32
    %c0_i32_0 = arith.constant 0 : i32
    return %c0_i32 : i32
  }
  func.func @transform_8(%arg0: i32, %arg1: i32) -> (i32, i32, i32) {
    %c0_i32 = arith.constant 0 : i32
    %c0_i32_0 = arith.constant 0 : i32
    return %arg0, %c0_i32, %arg1 : i32, i32, i32
  }
}

</mosaic_0001>

<llo_original>
// kernel: tpu_custom_call.1
$region0: #{tpu_custom_call.1}
  #allocation0 [shape = 'u32[]', space=smem, size = 0x4, offset = 0x4, fixed_abs, tag = 'smem constant byte address 0x4 - core index']
  #allocation1 [shape = 'u32[72,128]{1,0:T(1,128)}', space=vmem, size = 0x9000, scoped, tag = 'internal scratch']
  #allocation2 [shape = 'f32[4,146]{1,0:T(4,128)}', space=vmem, size = 0x1000, scoped, tag = 'scratch operand']
  #allocation3 [shape = 'f32[4,128]{1,0:T(4,128)}', space=vmem, size = 0x800, scoped, tag = 'scratch operand']
  %s0 = inlined_call_operand.vmem [shape: f32[2,2,4,9], index: 0, kind: input, shape index: {}]
  %s1 = inlined_call_operand.vmem [shape: f32[2,4,256], index: 1, kind: input, shape index: {}]
  %s2 = inlined_call_operand.vmem [shape: f32[2,2,4,9], index: 2, kind: input, shape index: {}]
  %s3 = inlined_call_operand.vmem [shape: f32[7,4,4], index: 3, kind: input, shape index: {}]
  %s4 = inlined_call_operand.vmem [shape: f32[4,1], index: 4, kind: input, shape index: {}]
  %s5 = inlined_call_operand.vmem [shape: f32[4,4], index: 5, kind: input, shape index: {}]
  %s6 = inlined_call_operand.vmem [shape: f32[4,1], index: 6, kind: input, shape index: {}]
  %s7 = inlined_call_operand.vmem [shape: f32[2], index: 7, kind: input, shape index: {}]
  %s8 = inlined_call_operand.hbm [shape: f32[2,4,256], index: 8, kind: output, shape index: {}]
  %s9 = sld [smem:[#allocation0]]
  $region69: #{tpu_custom_call.1} parent=0
    _
  %s11 = ssub.s32 1, %s9
  %s12 = scalar_select 0, %s11, %s9
  $region1: #{tpu_custom_call.1} parent=0
    #allocation4 [shape = 'u8[512]{0}', space=smem, size = 0x200, scoped, tag = 'input window, operand 7, single buffered']
    #allocation5 [shape = 's32[2]{0}', space=sflag, size = 0x8, scoped, tag = 'scoped memory for tpu_custom_call.1']
    #allocation6 [shape = 's32[2]{0}', space=sflag, size = 0x8, scoped, tag = 'scoped memory for tpu_custom_call.1']
    #allocation7 [shape = 'u8[4096]{0}', space=vmem, size = 0x1000, scoped, tag = 'output window, operand 0']
    %13 = vsyncpa [#allocation6], 0
    %14 = vsyncpa [#allocation5], 0
    %s15 = scalar_lea.sflag [#allocation5], 1
    %16 = vsyncpa %s15, 0
    loop: start=0, step=1, limit=6
    $region2: #{tpu_custom_call.1} parent=1 // loop_pre_header
      _
    $region3: #{tpu_custom_call.1} parent=1 // loop_header
      %s18 = sphi 0, %s22
      %p19 = scmp.ge.s32.totalorder %s18, 6
      %s25 = sphi 0, %s37
      %s26 = sphi 0, %s33
      %s27 = sphi 0, %s25
      %s28 = sphi 0, %s26
      %s29 = sphi 0, %s27
      %s30 = sphi 0, %s28
      %s42 = sphi 0, %s44
      %s45 = sphi 0, %s42
      %s46 = sphi 0, %s45
      %s62 = sphi 0, %s46
      %s70 = sphi 0, %s72
      %s73 = sphi 0, %s70
      %s74 = sphi 0, %s73
      %s90 = sphi 0, %s74
      %s98 = sphi 0, %s100
      %s101 = sphi 0, %s98
      %s102 = sphi 0, %s101
      %s118 = sphi 0, %s102
      %s122 = sphi 0, %s122
      %s124 = sphi 0, %s122
      %s125 = sphi 0, %s124
      %s139 = sphi 0, %s125
      %s143 = sphi 0, %s143
      %s145 = sphi 0, %s143
      %s146 = sphi 0, %s145
      %s160 = sphi 0, %s146
      %s164 = sphi 0, %s164
      %s166 = sphi 0, %s164
      %s167 = sphi 0, %s166
      %s181 = sphi 0, %s167
      %s185 = sphi 0, %s185
      %s187 = sphi 0, %s185
      %s188 = sphi 0, %s187
      %s202 = sphi 0, %s188
      %s206 = sphi 0, %s206
      %s208 = sphi 0, %s206
      %s209 = sphi 0, %s208
      %s223 = sphi 0, %s209
      %s231 = sphi 0, %s233
      %s234 = sphi 0, %s231
      %s235 = sphi 0, %s234
      %s251 = sphi 0, %s235
    $region4: #{tpu_custom_call.1} parent=1 // loop_header_branch
      %21 = sbr.rel (%p19) target = $region8
    $region5: #{tpu_custom_call.1} parent=1 // loop_body
      %s23 = ssub.s32 %s18, 1
      %s24 = ssub.s32 %s18, 2
      %s31 = sadd.s32 1, %s26
      %p32 = scmp.ge.s32.totalorder %s31, 2
      %s33 = scalar_select %p32, 0, %s31
      %s34 = sadd.s32 1, %s25
      %s35 = scalar_select %p32, %s34, %s25
      %p36 = scmp.ge.s32.totalorder %s35, 2
      %s37 = scalar_select %p36, 0, %s35
      %s38 = ssub.s32 %s25, %s37
      %s39 = ssub.s32 %s26, %s33
      %s40 = sor.u32 %s38, %s39
      %p41 = scmp.eq.s32.totalorder %s40, 0
      %s43 = sadd.s32 %s42, 1
      %s44 = scalar_select %p41, %s42, %s43
      %p47 = pneg %p41
      %p48 = scmp.eq.s32.totalorder %s18, 3
      %p49 = por %p47, %p48
      %p50 = scmp.ne.s32.totalorder %s42, %s45
      %p51 = scmp.eq.s32.totalorder %s18, 0
      %p52 = por %p50, %p51
      %p53 = scmp.ne.s32.totalorder %s42, %s45
      %p54 = scmp.eq.s32.totalorder %s23, 3
      %p55 = por %p53, %p54
      %p56 = scmp.ne.s32.totalorder %s45, %s46
      %p57 = scmp.eq.s32.totalorder %s23, 0
      %p58 = por %p56, %p57
      %p59 = scmp.ne.s32.totalorder %s45, %s46
      %p60 = scmp.eq.s32.totalorder %s24, 3
      %p61 = por %p59, %p60
      %p63 = scmp.ne.s32.totalorder %s46, %s62
      %p64 = scmp.eq.s32.totalorder %s24, 0
      %p65 = por %p63, %p64
      %s66 = ssub.s32 %s25, %s37
      %s67 = ssub.s32 %s26, %s33
      %s68 = sor.u32 %s66, %s67
      %p69 = scmp.eq.s32.totalorder %s68, 0
      %s71 = sadd.s32 %s70, 1
      %s72 = scalar_select %p69, %s70, %s71
      %p75 = pneg %p69
      %p76 = scmp.eq.s32.totalorder %s18, 3
      %p77 = por %p75, %p76
      %p78 = scmp.ne.s32.totalorder %s70, %s73
      %p79 = scmp.eq.s32.totalorder %s18, 0
      %p80 = por %p78, %p79
      %p81 = scmp.ne.s32.totalorder %s70, %s73
      %p82 = scmp.eq.s32.totalorder %s23, 3
      %p83 = por %p81, %p82
      %p84 = scmp.ne.s32.totalorder %s73, %s74
      %p85 = scmp.eq.s32.totalorder %s23, 0
      %p86 = por %p84, %p85
      %p87 = scmp.ne.s32.totalorder %s73, %s74
      %p88 = scmp.eq.s32.totalorder %s24, 3
      %p89 = por %p87, %p88
      %p91 = scmp.ne.s32.totalorder %s74, %s90
      %p92 = scmp.eq.s32.totalorder %s24, 0
      %p93 = por %p91, %p92
      %s94 = ssub.s32 %s25, %s37
      %s95 = ssub.s32 %s26, %s33
      %s96 = sor.u32 %s94, %s95
      %p97 = scmp.eq.s32.totalorder %s96, 0
      %s99 = sadd.s32 %s98, 1
      %s100 = scalar_select %p97, %s98, %s99
      %p103 = pneg %p97
      %p104 = scmp.eq.s32.totalorder %s18, 3
      %p105 = por %p103, %p104
      %p106 = scmp.ne.s32.totalorder %s98, %s101
      %p107 = scmp.eq.s32.totalorder %s18, 0
      %p108 = por %p106, %p107
      %p109 = scmp.ne.s32.totalorder %s98, %s101
      %p110 = scmp.eq.s32.totalorder %s23, 3
      %p111 = por %p109, %p110
      %p112 = scmp.ne.s32.totalorder %s101, %s102
      %p113 = scmp.eq.s32.totalorder %s23, 0
      %p114 = por %p112, %p113
      %p115 = scmp.ne.s32.totalorder %s101, %s102
      %p116 = scmp.eq.s32.totalorder %s24, 3
      %p117 = por %p115, %p116
      %p119 = scmp.ne.s32.totalorder %s102, %s118
      %p120 = scmp.eq.s32.totalorder %s24, 0
      %p121 = por %p119, %p120
      %s123 = sadd.s32 %s122, 1
      %p126 = scmp.eq.s32.totalorder %s18, 3
      %p127 = scmp.ne.s32.totalorder %s122, %s124
      %p128 = scmp.eq.s32.totalorder %s18, 0
      %p129 = por %p127, %p128
      %p130 = scmp.ne.s32.totalorder %s122, %s124
      %p131 = scmp.eq.s32.totalorder %s23, 3
      %p132 = por %p130, %p131
      %p133 = scmp.ne.s32.totalorder %s124, %s125
      %p134 = scmp.eq.s32.totalorder %s23, 0
      %p135 = por %p133, %p134
      %p136 = scmp.ne.s32.totalorder %s124, %s125
      %p137 = scmp.eq.s32.totalorder %s24, 3
      %p138 = por %p136, %p137
      %p140 = scmp.ne.s32.totalorder %s125, %s139
      %p141 = scmp.eq.s32.totalorder %s24, 0
      %p142 = por %p140, %p141
      %s144 = sadd.s32 %s143, 1
      %p147 = scmp.eq.s32.totalorder %s18, 3
      %p148 = scmp.ne.s32.totalorder %s143, %s145
      %p149 = scmp.eq.s32.totalorder %s18, 0
      %p150 = por %p148, %p149
      %p151 = scmp.ne.s32.totalorder %s143, %s145
      %p152 = scmp.eq.s32.totalorder %s23, 3
      %p153 = por %p151, %p152
      %p154 = scmp.ne.s32.totalorder %s145, %s146
      %p155 = scmp.eq.s32.totalorder %s23, 0
      %p156 = por %p154, %p155
      %p157 = scmp.ne.s32.totalorder %s145, %s146
      %p158 = scmp.eq.s32.totalorder %s24, 3
      %p159 = por %p157, %p158
      %p161 = scmp.ne.s32.totalorder %s146, %s160
      %p162 = scmp.eq.s32.totalorder %s24, 0
      %p163 = por %p161, %p162
      %s165 = sadd.s32 %s164, 1
      %p168 = scmp.eq.s32.totalorder %s18, 3
      %p169 = scmp.ne.s32.totalorder %s164, %s166
      %p170 = scmp.eq.s32.totalorder %s18, 0
      %p171 = por %p169, %p170
      %p172 = scmp.ne.s32.totalorder %s164, %s166
      %p173 = scmp.eq.s32.totalorder %s23, 3
      %p174 = por %p172, %p173
      %p175 = scmp.ne.s32.totalorder %s166, %s167
      %p176 = scmp.eq.s32.totalorder %s23, 0
      %p177 = por %p175, %p176
      %p178 = scmp.ne.s32.totalorder %s166, %s167
      %p179 = scmp.eq.s32.totalorder %s24, 3
      %p180 = por %p178, %p179
      %p182 = scmp.ne.s32.totalorder %s167, %s181
      %p183 = scmp.eq.s32.totalorder %s24, 0
      %p184 = por %p182, %p183
      %s186 = sadd.s32 %s185, 1
      %p189 = scmp.eq.s32.totalorder %s18, 3
      %p190 = scmp.ne.s32.totalorder %s185, %s187
      %p191 = scmp.eq.s32.totalorder %s18, 0
      %p192 = por %p190, %p191
      %p193 = scmp.ne.s32.totalorder %s185, %s187
      %p194 = scmp.eq.s32.totalorder %s23, 3
      %p195 = por %p193, %p194
      %p196 = scmp.ne.s32.totalorder %s187, %s188
      %p197 = scmp.eq.s32.totalorder %s23, 0
      %p198 = por %p196, %p197
      %p199 = scmp.ne.s32.totalorder %s187, %s188
      %p200 = scmp.eq.s32.totalorder %s24, 3
      %p201 = por %p199, %p200
      %p203 = scmp.ne.s32.totalorder %s188, %s202
      %p204 = scmp.eq.s32.totalorder %s24, 0
      %p205 = por %p203, %p204
      %s207 = sadd.s32 %s206, 1
      %p210 = scmp.eq.s32.totalorder %s18, 3
      %p211 = scmp.ne.s32.totalorder %s206, %s208
      %p212 = scmp.eq.s32.totalorder %s18, 0
      %p213 = por %p211, %p212
      %p214 = scmp.ne.s32.totalorder %s206, %s208
      %p215 = scmp.eq.s32.totalorder %s23, 3
      %p216 = por %p214, %p215
      %p217 = scmp.ne.s32.totalorder %s208, %s209
      %p218 = scmp.eq.s32.totalorder %s23, 0
      %p219 = por %p217, %p218
      %p220 = scmp.ne.s32.totalorder %s208, %s209
      %p221 = scmp.eq.s32.totalorder %s24, 3
      %p222 = por %p220, %p221
      %p224 = scmp.ne.s32.totalorder %s209, %s223
      %p225 = scmp.eq.s32.totalorder %s24, 0
      %p226 = por %p224, %p225
      %s227 = ssub.s32 %s25, %s37
      %s228 = ssub.s32 %s26, %s33
      %s229 = sor.u32 %s227, %s228
      %p230 = scmp.eq.s32.totalorder %s229, 0
      %s232 = sadd.s32 %s231, 1
      %s233 = scalar_select %p230, %s231, %s232
      %p236 = pneg %p230
      %p237 = scmp.eq.s32.totalorder %s18, 3
      %p238 = por %p236, %p237
      %p239 = scmp.ne.s32.totalorder %s231, %s234
      %p240 = scmp.eq.s32.totalorder %s18, 0
      %p241 = por %p239, %p240
      %p242 = scmp.ne.s32.totalorder %s231, %s234
      %p243 = scmp.eq.s32.totalorder %s23, 3
      %p244 = por %p242, %p243
      %p245 = scmp.ne.s32.totalorder %s234, %s235
      %p246 = scmp.eq.s32.totalorder %s23, 0
      %p247 = por %p245, %p246
      %p248 = scmp.ne.s32.totalorder %s234, %s235
      %p249 = scmp.eq.s32.totalorder %s24, 3
      %p250 = por %p248, %p249
      %p252 = scmp.ne.s32.totalorder %s235, %s251
      %p253 = scmp.eq.s32.totalorder %s24, 0
      %p254 = por %p252, %p253
      %p255 = scmp.le.s32.totalorder 1, %s18
      %p256 = scmp.lt.s32.totalorder %s18, 5
      %p257 = pnand %p255, %p256
      %p258 = pneg %p257
      // Predicated region
      $region9: #{tpu_custom_call.1} parent=5 // pred_check
        _
      $region10: #{tpu_custom_call.1} parent=5 // pred_check_branch
        %260 = sbr.rel (%p257) target = $region12
      $region11: #{tpu_custom_call.1} parent=5 // pred_region
        %s261 = ssub.s32 %s18, 1
        // Predicated region
        $region13: #{tpu_custom_call.1} parent=11 // pred_check
          %p262 = pneg %p135
        $region14: #{tpu_custom_call.1} parent=11 // pred_check_branch
          %264 = sbr.rel (%p262) target = $region16
        $region15: #{tpu_custom_call.1} parent=11 // pred_region
          _
        $region16: #{tpu_custom_call.1} parent=11 // pred_fallthru
          _
        // Predicated region
        $region17: #{tpu_custom_call.1} parent=11 // pred_check
          %p265 = pneg %p156
        $region18: #{tpu_custom_call.1} parent=11 // pred_check_branch
          %267 = sbr.rel (%p265) target = $region20
        $region19: #{tpu_custom_call.1} parent=11 // pred_region
          _
        $region20: #{tpu_custom_call.1} parent=11 // pred_fallthru
          _
        // Predicated region
        $region21: #{tpu_custom_call.1} parent=11 // pred_check
          %p268 = pneg %p177
        $region22: #{tpu_custom_call.1} parent=11 // pred_check_branch
          %270 = sbr.rel (%p268) target = $region24
        $region23: #{tpu_custom_call.1} parent=11 // pred_region
          _
        $region24: #{tpu_custom_call.1} parent=11 // pred_fallthru
          _
        // Predicated region
        $region25: #{tpu_custom_call.1} parent=11 // pred_check
          %p271 = pneg %p198
        $region26: #{tpu_custom_call.1} parent=11 // pred_check_branch
          %273 = sbr.rel (%p271) target = $region28
        $region27: #{tpu_custom_call.1} parent=11 // pred_region
          _
        $region28: #{tpu_custom_call.1} parent=11 // pred_fallthru
          _
        // Predicated region
        $region29: #{tpu_custom_call.1} parent=11 // pred_check
          %p274 = pneg %p219
        $region30: #{tpu_custom_call.1} parent=11 // pred_check_branch
          %276 = sbr.rel (%p274) target = $region32
        $region31: #{tpu_custom_call.1} parent=11 // pred_region
          %278 = vsyncadd [#allocation6], 0
          %s280 = sshll.u32 %s7, 4
          %s281 = int_to_ptr.vmem [resolvable:$true] %s280
          %283 = dma.vmem_to_smem %s281, 16, [#allocation4], [#allocation6]
        $region32: #{tpu_custom_call.1} parent=11 // pred_fallthru
          _
      $region12: #{tpu_custom_call.1} parent=5 // pred_fallthru
        _
      %p284 = scmp.lt.s32.totalorder %s18, 4
      // Predicated region
      $region33: #{tpu_custom_call.1} parent=5 // pred_check
        %p285 = pneg %p284
      $region34: #{tpu_custom_call.1} parent=5 // pred_check_branch
        %287 = sbr.rel (%p285) target = $region36
      $region35: #{tpu_custom_call.1} parent=5 // pred_region
        // Predicated region
        $region37: #{tpu_custom_call.1} parent=35 // pred_check
          %p288 = pneg %p52
        $region38: #{tpu_custom_call.1} parent=35 // pred_check_branch
          %290 = sbr.rel (%p288) target = $region40
        $region39: #{tpu_custom_call.1} parent=35 // pred_region
          %p291 = scmp.lt.s32.totalorder %s25, 1
          %s292 = scalar_select %p291, %s25, 1
          %p293 = scmp.lt.s32.totalorder %s26, 1
          %s294 = scalar_select %p293, %s26, 1
          %s295 = smul.addr %s292, 2
          %s296 = sadd.s32 %s294, %s295
          %s297 = smul.addr %s296, 4
          %s298 = scalar_lea.vmem %s0, %s297
        $region40: #{tpu_custom_call.1} parent=35 // pred_fallthru
          _
        // Predicated region
        $region41: #{tpu_custom_call.1} parent=35 // pred_check
          %p299 = pneg %p80
        $region42: #{tpu_custom_call.1} parent=35 // pred_check_branch
          %301 = sbr.rel (%p299) target = $region44
        $region43: #{tpu_custom_call.1} parent=35 // pred_region
          %p302 = scmp.lt.s32.totalorder %s25, 1
          %s303 = scalar_select %p302, %s25, 1
          %p304 = scmp.lt.s32.totalorder %s26, 1
          %s305 = scalar_select %p304, %s26, 1
          %s306 = smul.addr %s303, 2
          %s307 = sadd.s32 %s305, %s306
          %s308 = smul.addr %s307, 4
          %s309 = scalar_lea.vmem %s1, %s308
        $region44: #{tpu_custom_call.1} parent=35 // pred_fallthru
          _
        // Predicated region
        $region45: #{tpu_custom_call.1} parent=35 // pred_check
          %p310 = pneg %p108
        $region46: #{tpu_custom_call.1} parent=35 // pred_check_branch
          %312 = sbr.rel (%p310) target = $region48
        $region47: #{tpu_custom_call.1} parent=35 // pred_region
          %p313 = scmp.lt.s32.totalorder %s25, 1
          %s314 = scalar_select %p313, %s25, 1
          %p315 = scmp.lt.s32.totalorder %s26, 1
          %s316 = scalar_select %p315, %s26, 1
          %s317 = smul.addr %s314, 2
          %s318 = sadd.s32 %s316, %s317
          %s319 = smul.addr %s318, 4
          %s320 = scalar_lea.vmem %s2, %s319
        $region48: #{tpu_custom_call.1} parent=35 // pred_fallthru
          _
      $region36: #{tpu_custom_call.1} parent=5 // pred_fallthru
        _
      %p321 = scmp.le.s32.totalorder 1, %s18
      %p322 = scmp.lt.s32.totalorder %s18, 5
      %p323 = pnand %p321, %p322
      %p324 = pneg %p323
      // Predicated region
      $region49: #{tpu_custom_call.1} parent=5 // pred_check
        _
      $region50: #{tpu_custom_call.1} parent=5 // pred_check_branch
        %326 = sbr.rel (%p323) target = $region52
      $region51: #{tpu_custom_call.1} parent=5 // pred_region
        %s327 = ssub.s32 %s18, 1
        // Predicated region
        $region53: #{tpu_custom_call.1} parent=51 // pred_check
          %p328 = pneg %p219
        $region54: #{tpu_custom_call.1} parent=51 // pred_check_branch
          %330 = sbr.rel (%p328) target = $region56
        $region55: #{tpu_custom_call.1} parent=51 // pred_region
          %332 = dma.done [#allocation6], 16
        $region56: #{tpu_custom_call.1} parent=51 // pred_fallthru
          _
        %333 = sfence
        %p334 = scmp.lt.s32.totalorder %s27, 1
        %s335 = scalar_select %p334, %s27, 1
        %p336 = scmp.lt.s32.totalorder %s28, 1
        %s337 = scalar_select %p336, %s28, 1
        %s338 = smul.addr %s335, 2
        %s339 = sadd.s32 %s337, %s338
        %s340 = smul.addr %s339, 4
        %s341 = scalar_lea.vmem %s0, %s340
        %p342 = pneg %p58
        %p343 = pneg %p55
        %p344 = scmp.lt.s32.totalorder %s27, 1
        %s345 = scalar_select %p344, %s27, 1
        %p346 = scmp.lt.s32.totalorder %s28, 1
        %s347 = scalar_select %p346, %s28, 1
        %s348 = smul.addr %s345, 2
        %s349 = sadd.s32 %s347, %s348
        %s350 = smul.addr %s349, 4
        %s351 = scalar_lea.vmem %s1, %s350
        %p352 = pneg %p86
        %p353 = pneg %p83
        %p354 = scmp.lt.s32.totalorder %s27, 1
        %s355 = scalar_select %p354, %s27, 1
        %p356 = scmp.lt.s32.totalorder %s28, 1
        %s357 = scalar_select %p356, %s28, 1
        %s358 = smul.addr %s355, 2
        %s359 = sadd.s32 %s357, %s358
        %s360 = smul.addr %s359, 4
        %s361 = scalar_lea.vmem %s2, %s360
        %p362 = pneg %p114
        %p363 = pneg %p111
        %p364 = pneg %p135
        %p365 = pneg %p132
        %p366 = pneg %p156
        %p367 = pneg %p153
        %p368 = pneg %p177
        %p369 = pneg %p174
        %p370 = pneg %p198
        %p371 = pneg %p195
        %p372 = pneg %p219
        %p373 = pneg %p216
        %p374 = pneg %p247
        %p375 = pneg %p244
        %s376 = sand.u32 %s234, 1
        %s377 = scalar_lea.sflag [#allocation5], %s376
        %s378 = sand.u32 %s234, 1
        %s379 = smul.addr %s378, 4
        %s380 = scalar_lea.vmem [#allocation7], %s379
        %p381 = scmp.lt.s32.totalorder %s27, 1
        %s382 = scalar_select %p381, %s27, 1
        %p383 = scmp.lt.s32.totalorder %s28, 1
        %s384 = scalar_select %p383, %s28, 1
        %s385 = smul.addr %s382, 2
        %s386 = sadd.s32 %s384, %s385
        %s387 = smul.addr %s386, 4
        %s388 = scalar_lea.vmem %s0, %s387
        %p389 = scmp.lt.s32.totalorder %s27, 1
        %s390 = scalar_select %p389, %s27, 1
        %p391 = scmp.lt.s32.totalorder %s28, 1
        %s392 = scalar_select %p391, %s28, 1
        %s393 = smul.addr %s390, 2
        %s394 = sadd.s32 %s392, %s393
        %s395 = smul.addr %s394, 4
        %s396 = scalar_lea.vmem %s1, %s395
        %p397 = scmp.lt.s32.totalorder %s27, 1
        %s398 = scalar_select %p397, %s27, 1
        %p399 = scmp.lt.s32.totalorder %s28, 1
        %s400 = scalar_select %p399, %s28, 1
        %s401 = smul.addr %s398, 2
        %s402 = sadd.s32 %s400, %s401
        %s403 = smul.addr %s402, 4
        %s404 = scalar_lea.vmem %s2, %s403
        %v405 = vld [vmem:[%s388] sm:$0xf]
        %vm406 = vcmask 68608
        %407 = vst.msk [vmem:[#allocation2] sm:$0xf] %vm406, %v405
        %v408 = vld [vmem:[%s396] sm:$0xf]
        %410 = vrot.lane.b32.xlu0 %v408, 9
        %v411 = vpop.permute.xlu0 %410
        %v412 = vrot.slane %v411, 4
        %vm413 = vcmask 72704
        %v414 = vsel %vm413, %v412, %v411
        %vm416 = vcmask 1043528
        %vm417 = vcmask 72708
        %vm418 = vmor %vm417, %vm416
        %419 = vst.msk [vmem:[#allocation2] sm:$0xff] %vm418, %v414
        %v420 = vld [vmem:[%s404] sm:$0xf]
        %422 = vrot.lane.b32.xlu0 %v420, 9
        %v423 = vpop.permute.xlu0 %422
        %vm425 = vcmask 142408
        %426 = vst.msk [vmem:[#allocation2 + $0x4] sm:$0xf] %vm425, %v423
        %v427 = vld [vmem:[%s3] sm:$0xf]
        %v428 = vld [vmem:[#allocation2] sm:$0xf]
        %v429 = vld [vmem:[%s4] sm:$0xf]
        %431 = vset.pattern.permute.xlu0 0
        %432 = vperm.xlu0 %431, %v429
        %v433 = vpop.permute.xlu0 %432
        %vm435 = vcmask 31744
        %v437 = vsel %vm435, %v427, 0
        %vm439 = vcmask 1043456
        %v441 = vsel %vm439, %v428, 0
        %443 = vmatpush.msra.mxu0 0.0
        %444 = vmatpush.msra.mxu0 0.0
        %445 = vmatpush.msra.mxu0 0.0
        %446 = vmatpush.msra.mxu0 0.0
        %447 = vmatpush.msra.mxu0 0.0
        %448 = vmatpush.msra.mxu0 0.0
        %449 = vmatpush.msra.mxu0 0.0
        %450 = vmatpush.msra.mxu0 0.0
        %451 = vmatpush.msra.mxu0 0.0
        %452 = vmatpush.msra.mxu0 0.0
        %453 = vmatpush.msra.mxu0 0.0
        %454 = vmatpush.msra.mxu0 0.0
        %455 = vmatpush.msra.mxu0 0.0
        %456 = vmatpush.msra.mxu0 0.0
        %457 = vmatpush.msra.mxu0 0.0
        %458 = vmatpush.msra.mxu0 %v441
        %459 = vmatmul.f32.gmra.mxu0 %v437
        %v460 = vpop.f32.mrf.mxu0
        %v461 = vadd.f32 %v433, %v460
        %462 = vdwg.mxu0
        %463 = vst [vmem:[#allocation3] sm:$0xf] %v461
        %v464 = vld [vmem:[#allocation3] sm:$0xf]
        %s465 = scalar_lea.vmem %s3, 4
        %v466 = vld [vmem:[%s465] sm:$0xf]
        %v467 = vld [vmem:[#allocation2] sm:$0xff]
        %469 = vst [vmem:[#allocation1] ss:$2 sm:$0xff] %v467
        %v470 = vld.sshfl [vmem:[#allocation1] sm:$0xff pattern:$0x75316420]
        %v471 = vld.sshfl [vmem:[#allocation1 + $0x8] sm:$0xff pattern:$0x75316420]
        %472 = vrot.lane.b32.xlu0 %v470, 125
        %v473 = vpop.permute.xlu0 %472
        %474 = vrot.lane.b32.xlu0 %v471, 125
        %v475 = vpop.permute.xlu0 %474
        %vm476 = vcmask 1022976
        %v477 = vsel %vm476, %v473, %v475
        %v479 = vsel %vm435, %v466, 0
        %v481 = vsel %vm439, %v477, 0
        %483 = vmatpush.msra.mxu0 0.0
        %484 = vmatpush.msra.mxu0 0.0
        %485 = vmatpush.msra.mxu0 0.0
        %486 = vmatpush.msra.mxu0 0.0
        %487 = vmatpush.msra.mxu0 0.0
        %488 = vmatpush.msra.mxu0 0.0
        %489 = vmatpush.msra.mxu0 0.0
        %490 = vmatpush.msra.mxu0 0.0
        %491 = vmatpush.msra.mxu0 0.0
        %492 = vmatpush.msra.mxu0 0.0
        %493 = vmatpush.msra.mxu0 0.0
        %494 = vmatpush.msra.mxu0 0.0
        %495 = vmatpush.msra.mxu0 0.0
        %496 = vmatpush.msra.mxu0 0.0
        %497 = vmatpush.msra.mxu0 0.0
        %498 = vmatpush.msra.mxu0 %v481
        %499 = vmatmul.f32.gmra.mxu0 %v479
        %v500 = vpop.f32.mrf.mxu0
        %v501 = vadd.f32 0.0, %v500
        %502 = vdwg.mxu0
        %v503 = vadd.f32 %v464, %v501
        %504 = vst [vmem:[#allocation3] sm:$0xf] %v503
        %v505 = vld [vmem:[#allocation3] sm:$0xf]
        %s506 = scalar_lea.vmem %s3, 8
        %v507 = vld [vmem:[%s506] sm:$0xf]
        %v508 = vld [vmem:[#allocation2] sm:$0xff]
        %510 = vst [vmem:[#allocation1] ss:$2 sm:$0xff] %v508
        %v511 = vld.sshfl [vmem:[#allocation1] sm:$0xff pattern:$0x75316420]
        %v512 = vld.sshfl [vmem:[#allocation1 + $0x8] sm:$0xff pattern:$0x75316420]
        %513 = vrot.lane.b32.xlu0 %v511, 122
        %v514 = vpop.permute.xlu0 %513
        %515 = vrot.lane.b32.xlu0 %v512, 122
        %v516 = vpop.permute.xlu0 %515
        %vm517 = vcmask 998400
        %v518 = vsel %vm517, %v514, %v516
        %v520 = vsel %vm435, %v507, 0
        %v522 = vsel %vm439, %v518, 0
        %524 = vmatpush.msra.mxu0 0.0
        %525 = vmatpush.msra.mxu0 0.0
        %526 = vmatpush.msra.mxu0 0.0
        %527 = vmatpush.msra.mxu0 0.0
        %528 = vmatpush.msra.mxu0 0.0
        %529 = vmatpush.msra.mxu0 0.0
        %530 = vmatpush.msra.mxu0 0.0
        %531 = vmatpush.msra.mxu0 0.0
        %532 = vmatpush.msra.mxu0 0.0
        %533 = vmatpush.msra.mxu0 0.0
        %534 = vmatpush.msra.mxu0 0.0
        %535 = vmatpush.msra.mxu0 0.0
        %536 = vmatpush.msra.mxu0 0.0
        %537 = vmatpush.msra.mxu0 0.0
        %538 = vmatpush.msra.mxu0 0.0
        %539 = vmatpush.msra.mxu0 %v522
        %540 = vmatmul.f32.gmra.mxu0 %v520
        %v541 = vpop.f32.mrf.mxu0
        %v542 = vadd.f32 0.0, %v541
        %543 = vdwg.mxu0
        %v544 = vadd.f32 %v505, %v542
        %545 = vst [vmem:[#allocation3] sm:$0xf] %v544
        %v546 = vld [vmem:[#allocation3] sm:$0xf]
        %s547 = scalar_lea.vmem %s3, 12
        %v548 = vld [vmem:[%s547] sm:$0xf]
        %v549 = vld [vmem:[#allocation2] sm:$0xff]
        %551 = vst [vmem:[#allocation1] ss:$2 sm:$0xff] %v549
        %v552 = vld.sshfl [vmem:[#allocation1] sm:$0xff pattern:$0x75316420]
        %v553 = vld.sshfl [vmem:[#allocation1 + $0x8] sm:$0xff pattern:$0x75316420]
        %554 = vrot.lane.b32.xlu0 %v552, 119
        %v555 = vpop.permute.xlu0 %554
        %556 = vrot.lane.b32.xlu0 %v553, 119
        %v557 = vpop.permute.xlu0 %556
        %vm558 = vcmask 973824
        %v559 = vsel %vm558, %v555, %v557
        %v561 = vsel %vm435, %v548, 0
        %v563 = vsel %vm439, %v559, 0
        %565 = vmatpush.msra.mxu0 0.0
        %566 = vmatpush.msra.mxu0 0.0
        %567 = vmatpush.msra.mxu0 0.0
        %568 = vmatpush.msra.mxu0 0.0
        %569 = vmatpush.msra.mxu0 0.0
        %570 = vmatpush.msra.mxu0 0.0
        %571 = vmatpush.msra.mxu0 0.0
        %572 = vmatpush.msra.mxu0 0.0
        %573 = vmatpush.msra.mxu0 0.0
        %574 = vmatpush.msra.mxu0 0.0
        %575 = vmatpush.msra.mxu0 0.0
        %576 = vmatpush.msra.mxu0 0.0
        %577 = vmatpush.msra.mxu0 0.0
        %578 = vmatpush.msra.mxu0 0.0
        %579 = vmatpush.msra.mxu0 0.0
        %580 = vmatpush.msra.mxu0 %v563
        %581 = vmatmul.f32.gmra.mxu0 %v561
        %v582 = vpop.f32.mrf.mxu0
        %v583 = vadd.f32 0.0, %v582
        %584 = vdwg.mxu0
        %v585 = vadd.f32 %v546, %v583
        %586 = vst [vmem:[#allocation3] sm:$0xf] %v585
        %v587 = vld [vmem:[#allocation3] sm:$0xf]
        %s588 = scalar_lea.vmem %s3, 16
        %v589 = vld [vmem:[%s588] sm:$0xf]
        %v590 = vld [vmem:[#allocation2] sm:$0xff]
        %592 = vst [vmem:[#allocation1] ss:$2 sm:$0xff] %v590
        %v593 = vld.sshfl [vmem:[#allocation1] sm:$0xff pattern:$0x75316420]
        %v594 = vld.sshfl [vmem:[#allocation1 + $0x8] sm:$0xff pattern:$0x75316420]
        %595 = vrot.lane.b32.xlu0 %v593, 116
        %v596 = vpop.permute.xlu0 %595
        %597 = vrot.lane.b32.xlu0 %v594, 116
        %v598 = vpop.permute.xlu0 %597
        %vm599 = vcmask 949248
        %v600 = vsel %vm599, %v596, %v598
        %v602 = vsel %vm435, %v589, 0
        %v604 = vsel %vm439, %v600, 0
        %606 = vmatpush.msra.mxu0 0.0
        %607 = vmatpush.msra.mxu0 0.0
        %608 = vmatpush.msra.mxu0 0.0
        %609 = vmatpush.msra.mxu0 0.0
        %610 = vmatpush.msra.mxu0 0.0
        %611 = vmatpush.msra.mxu0 0.0
        %612 = vmatpush.msra.mxu0 0.0
        %613 = vmatpush.msra.mxu0 0.0
        %614 = vmatpush.msra.mxu0 0.0
        %615 = vmatpush.msra.mxu0 0.0
        %616 = vmatpush.msra.mxu0 0.0
        %617 = vmatpush.msra.mxu0 0.0
        %618 = vmatpush.msra.mxu0 0.0
        %619 = vmatpush.msra.mxu0 0.0
        %620 = vmatpush.msra.mxu0 0.0
        %621 = vmatpush.msra.mxu0 %v604
        %622 = vmatmul.f32.gmra.mxu0 %v602
        %v623 = vpop.f32.mrf.mxu0
        %v624 = vadd.f32 0.0, %v623
        %625 = vdwg.mxu0
        %v626 = vadd.f32 %v587, %v624
        %627 = vst [vmem:[#allocation3] sm:$0xf] %v626
        %v628 = vld [vmem:[#allocation3] sm:$0xf]
        %s629 = scalar_lea.vmem %s3, 20
        %v630 = vld [vmem:[%s629] sm:$0xf]
        %v631 = vld [vmem:[#allocation2] sm:$0xff]
        %633 = vst [vmem:[#allocation1] ss:$2 sm:$0xff] %v631
        %v634 = vld.sshfl [vmem:[#allocation1] sm:$0xff pattern:$0x75316420]
        %v635 = vld.sshfl [vmem:[#allocation1 + $0x8] sm:$0xff pattern:$0x75316420]
        %636 = vrot.lane.b32.xlu0 %v634, 113
        %v637 = vpop.permute.xlu0 %636
        %638 = vrot.lane.b32.xlu0 %v635, 113
        %v639 = vpop.permute.xlu0 %638
        %vm640 = vcmask 924672
        %v641 = vsel %vm640, %v637, %v639
        %v643 = vsel %vm435, %v630, 0
        %v645 = vsel %vm439, %v641, 0
        %647 = vmatpush.msra.mxu0 0.0
        %648 = vmatpush.msra.mxu0 0.0
        %649 = vmatpush.msra.mxu0 0.0
        %650 = vmatpush.msra.mxu0 0.0
        %651 = vmatpush.msra.mxu0 0.0
        %652 = vmatpush.msra.mxu0 0.0
        %653 = vmatpush.msra.mxu0 0.0
        %654 = vmatpush.msra.mxu0 0.0
        %655 = vmatpush.msra.mxu0 0.0
        %656 = vmatpush.msra.mxu0 0.0
        %657 = vmatpush.msra.mxu0 0.0
        %658 = vmatpush.msra.mxu0 0.0
        %659 = vmatpush.msra.mxu0 0.0
        %660 = vmatpush.msra.mxu0 0.0
        %661 = vmatpush.msra.mxu0 0.0
        %662 = vmatpush.msra.mxu0 %v645
        %663 = vmatmul.f32.gmra.mxu0 %v643
        %v664 = vpop.f32.mrf.mxu0
        %v665 = vadd.f32 0.0, %v664
        %666 = vdwg.mxu0
        %v667 = vadd.f32 %v628, %v665
        %668 = vst [vmem:[#allocation3] sm:$0xf] %v667
        %v669 = vld [vmem:[#allocation3] sm:$0xf]
        %s670 = scalar_lea.vmem %s3, 24
        %v671 = vld [vmem:[%s670] sm:$0xf]
        %v672 = vld [vmem:[#allocation2] sm:$0xff]
        %674 = vst [vmem:[#allocation1] ss:$2 sm:$0xff] %v672
        %v675 = vld.sshfl [vmem:[#allocation1] sm:$0xff pattern:$0x75316420]
        %v676 = vld.sshfl [vmem:[#allocation1 + $0x8] sm:$0xff pattern:$0x75316420]
        %677 = vrot.lane.b32.xlu0 %v675, 110
        %v678 = vpop.permute.xlu0 %677
        %679 = vrot.lane.b32.xlu0 %v676, 110
        %v680 = vpop.permute.xlu0 %679
        %vm681 = vcmask 900096
        %v682 = vsel %vm681, %v678, %v680
        %v684 = vsel %vm435, %v671, 0
        %v686 = vsel %vm439, %v682, 0
        %688 = vmatpush.msra.mxu0 0.0
        %689 = vmatpush.msra.mxu0 0.0
        %690 = vmatpush.msra.mxu0 0.0
        %691 = vmatpush.msra.mxu0 0.0
        %692 = vmatpush.msra.mxu0 0.0
        %693 = vmatpush.msra.mxu0 0.0
        %694 = vmatpush.msra.mxu0 0.0
        %695 = vmatpush.msra.mxu0 0.0
        %696 = vmatpush.msra.mxu0 0.0
        %697 = vmatpush.msra.mxu0 0.0
        %698 = vmatpush.msra.mxu0 0.0
        %699 = vmatpush.msra.mxu0 0.0
        %700 = vmatpush.msra.mxu0 0.0
        %701 = vmatpush.msra.mxu0 0.0
        %702 = vmatpush.msra.mxu0 0.0
        %703 = vmatpush.msra.mxu0 %v686
        %704 = vmatmul.f32.gmra.mxu0 %v684
        %v705 = vpop.f32.mrf.mxu0
        %v706 = vadd.f32 0.0, %v705
        %707 = vdwg.mxu0
        %v708 = vadd.f32 %v669, %v706
        %709 = vst [vmem:[#allocation3] sm:$0xf] %v708
        %s710 = sld [smem:[#allocation4]]
        %s711 = sld [smem:[#allocation4 + $0x1]]
        %v712 = vld [vmem:[#allocation3] sm:$0xf]
        %vm713 = vcmp.gt.f32.partialorder %v712, 0.0
        %v714 = vstv %s710
        %v715 = vmul.f32 %v714, %v712
        %v716 = vsel %vm713, %v712, %v715
        %v717 = vld [vmem:[%s5] sm:$0xf]
        %v718 = vld [vmem:[%s6] sm:$0xf]
        %720 = vset.pattern.permute.xlu0 0
        %721 = vperm.xlu0 %720, %v718
        %v722 = vpop.permute.xlu0 %721
        %v725 = vsel %vm435, %v717, 0
        %v728 = vsel %vm439, %v716, 0
        %730 = vmatpush.msra.mxu0 0.0
        %731 = vmatpush.msra.mxu0 0.0
        %732 = vmatpush.msra.mxu0 0.0
        %733 = vmatpush.msra.mxu0 0.0
        %734 = vmatpush.msra.mxu0 0.0
        %735 = vmatpush.msra.mxu0 0.0
        %736 = vmatpush.msra.mxu0 0.0
        %737 = vmatpush.msra.mxu0 0.0
        %738 = vmatpush.msra.mxu0 0.0
        %739 = vmatpush.msra.mxu0 0.0
        %740 = vmatpush.msra.mxu0 0.0
        %741 = vmatpush.msra.mxu0 0.0
        %742 = vmatpush.msra.mxu0 0.0
        %743 = vmatpush.msra.mxu0 0.0
        %744 = vmatpush.msra.mxu0 0.0
        %745 = vmatpush.msra.mxu0 %v728
        %746 = vmatmul.f32.gmra.mxu0 %v725
        %v747 = vpop.f32.mrf.mxu0
        %v748 = vadd.f32 %v722, %v747
        %749 = vdwg.mxu0
        %vm750 = vcmp.gt.f32.partialorder %v748, 0.0
        %v751 = vstv %s711
        %v752 = vmul.f32 %v751, %v748
        %v753 = vsel %vm750, %v748, %v752
        %v754 = vld [vmem:[%s396] sm:$0xf]
        %v755 = vadd.f32 %v753, %v754
        %756 = vst [vmem:[%s380] sm:$0xf] %v755
        %s757 = sand.u32 %s234, 1
        %s758 = scalar_lea.sflag [#allocation5], %s757
        %s759 = sand.u32 %s234, 1
        %s760 = smul.addr %s759, 4
        %s761 = scalar_lea.vmem [#allocation7], %s760
        // Predicated region
        $region57: #{tpu_custom_call.1} parent=51 // pred_check
          %p762 = pneg %p244
        $region58: #{tpu_custom_call.1} parent=51 // pred_check_branch
          %764 = sbr.rel (%p762) target = $region60
        $region59: #{tpu_custom_call.1} parent=51 // pred_region
          %766 = vsyncadd %s758, 0
          %s767 = smul.addr %s27, 2
          %s768 = sadd.s32 %s28, %s767
          %s769 = smul.addr %s768, 4
          %s770 = scalar_lea.hbm %s8, %s769
          %s772 = sshll.u32 %s761, 4
          %s773 = int_to_ptr.vmem [resolvable:$true] %s772
          %s774 = sshll.u32 %s770, 4
          %s775 = int_to_ptr.hbm [resolvable:$true] %s774
          %777 = dma.vmem_to_hbm [thread:$0]  %s773, 64, %s775, %s758
        $region60: #{tpu_custom_call.1} parent=51 // pred_fallthru
          _
      $region52: #{tpu_custom_call.1} parent=5 // pred_fallthru
        _
      %p778 = scmp.le.s32.totalorder 2, %s18
      // Predicated region
      $region61: #{tpu_custom_call.1} parent=5 // pred_check
        %p779 = pneg %p778
      $region62: #{tpu_custom_call.1} parent=5 // pred_check_branch
        %781 = sbr.rel (%p779) target = $region64
      $region63: #{tpu_custom_call.1} parent=5 // pred_region
        %s782 = ssub.s32 %s18, 2
        // Predicated region
        $region65: #{tpu_custom_call.1} parent=63 // pred_check
          %p783 = pneg %p250
        $region66: #{tpu_custom_call.1} parent=63 // pred_check_branch
          %785 = sbr.rel (%p783) target = $region68
        $region67: #{tpu_custom_call.1} parent=63 // pred_region
          %s786 = sand.u32 %s235, 1
          %s787 = scalar_lea.sflag [#allocation5], %s786
          %s788 = sand.u32 %s235, 1
          %s789 = smul.addr %s788, 4
          %s790 = scalar_lea.vmem [#allocation7], %s789
          %792 = dma.done %s787, 64
        $region68: #{tpu_custom_call.1} parent=63 // pred_fallthru
          _
      $region64: #{tpu_custom_call.1} parent=5 // pred_fallthru
        _
    $region6: #{tpu_custom_call.1} parent=1 // loop_footer
      %s22 = sadd.s32 1, %s18
    $region7: #{tpu_custom_call.1} parent=1 // loop_footer_branch
      %17 = sbr.rel target = $region3
    $region8: #{tpu_custom_call.1} parent=1 // loop_exit
      _
    %793 = vsyncpa [#allocation5], 1
    %s794 = scalar_lea.sflag [#allocation5], 1
    %795 = vsyncpa %s794, 1
    %796 = vsyncpa [#allocation6], 1
    %s797 = scalar_lea.sflag [#allocation6], 1
    %798 = vsyncpa %s797, 1

</llo_original>
